<compile_context>
chip_gen: v7x
topology: tpu7x:2x2x1
jax: 0.10.0
libtpu: 0.0.40
codegen_flags: <defaults>
</compile_context>

<pallas_src>
import math

import jax
import jax.numpy as jnp
from jax import lax
from jax.experimental import pallas as pl
from jax.experimental.pallas import tpu as pltpu


LANE = 128     # lane width
ALIGN = 16     # sublane alignment for slab sections (safe for f32 and bf16)


def _round_up(x, m):
    return (x + m - 1) // m * m


# --------------------------------------------------------------------------
# Parameter initialization (PyTorch nn.Linear layout: weight (out, in)).
# --------------------------------------------------------------------------
def init_critic_params(key, n_agent, dim_observation, dim_action, dim_laser,
                       las_output, hidden_layer, second_hidden_layer):
    obs_dim = dim_observation * n_agent
    act_dim = dim_action * n_agent
    las_dim = dim_laser * n_agent
    las_out_dim = las_output * n_agent
    hidden_dim = hidden_layer * n_agent
    second_hidden_dim = second_hidden_layer * n_agent

    def linear(k, fan_in, fan_out):
        kw, kb = jax.random.split(k)
        bound = 1.0 / math.sqrt(fan_in)
        w = jax.random.uniform(kw, (fan_out, fan_in), jnp.float32, -bound, bound)
        b = jax.random.uniform(kb, (fan_out,), jnp.float32, -bound, bound)
        return w, b

    kp, k1, k2, k3 = jax.random.split(key, 4)
    w_pre, b_pre = linear(kp, las_dim, las_out_dim)
    w1, b1 = linear(k1, obs_dim + las_out_dim + act_dim, hidden_dim)
    w2, b2 = linear(k2, hidden_dim, second_hidden_dim)
    w3, b3 = linear(k3, second_hidden_dim, 1)

    dims = dict(obs_dim=obs_dim, act_dim=act_dim, las_dim=las_dim,
                las_out_dim=las_out_dim, hidden_dim=hidden_dim,
                second_hidden_dim=second_hidden_dim, out_dim=1)
    params = dict(w_pre=w_pre, b_pre=b_pre, w1=w1, b1=b1,
                  w2=w2, b2=b2, w3=w3, b3=b3)
    return params, dims


# --------------------------------------------------------------------------
# Pack parameters: one lane-padded weight slab (param_dtype) + f32 bias block.
# --------------------------------------------------------------------------
def pack_critic_params(params, dims, param_dtype=jnp.float32):
    obs_dim, act_dim = dims["obs_dim"], dims["act_dim"]
    las_dim, las_out = dims["las_dim"], dims["las_out_dim"]
    hid, hid2 = dims["hidden_dim"], dims["second_hidden_dim"]

    P = _round_up(las_out, LANE)      # padded PreFC output width
    H1P = _round_up(hid, LANE)        # padded FC1 output width
    H2P = _round_up(hid2, LANE)       # padded FC2 output width
    width_max = max(P, H1P, H2P)

    def pad_rows(a, rows):
        return jnp.pad(a, ((0, rows - a.shape[0]), (0, 0)))

    # transpose to (in, out); split/merge FC1 rows to match the wrapper's
    # [obs, acts] concatenation and the separate `pre` operand.
    w_pre = params["w_pre"].T                         # (las_dim, las_out)
    w1 = params["w1"].T                               # (obs+las_out+act, hid)
    w1_obs = w1[:obs_dim]
    w1_pre = w1[obs_dim:obs_dim + las_out]
    w1_act = w1[obs_dim + las_out:]
    w1_oa = jnp.concatenate([w1_obs, w1_act], axis=0)  # (obs+act, hid)
    w2 = params["w2"].T                               # (hid, hid2)
    w3t = params["w3"]                                 # (1, hid2)  (out, in)

    sections = [
        # name,    array (in,out layout),     padded out-width
        ("w_pre",  w_pre,                      P),
        ("w1_oa",  w1_oa,                      H1P),
        ("w1_pre", pad_rows(w1_pre, P),        H1P),  # rows match padded `pre`
        ("w2",     pad_rows(w2, H1P),          H2P),  # rows match padded h1
        ("w3t",    pad_rows(w3t, 8),           H2P),  # read as (8, H2P) tile
    ]

    layout = {"dims": dims, "widths": dict(P=P, H1P=H1P, H2P=H2P, WMAX=width_max)}
    blocks, offset = [], 0
    for name, arr, width in sections:
        rows = arr.shape[0]
        rows_alloc = _round_up(rows, ALIGN)
        block = jnp.zeros((rows_alloc, width_max), jnp.float32)
        block = block.at[:rows, :arr.shape[1]].set(arr.astype(jnp.float32))
        blocks.append(block)
        layout[name] = (offset, rows, width)
        offset += rows_alloc
    slab = jnp.concatenate(blocks, axis=0).astype(param_dtype)

    # Biases stay f32 regardless of param_dtype (epilogue is f32, never on MXU).
    biases = jnp.zeros((8, width_max), jnp.float32)
    biases = biases.at[0, :las_out].set(params["b_pre"])
    biases = biases.at[1, :hid].set(params["b1"])
    biases = biases.at[2, :hid2].set(params["b2"])
    biases = biases.at[3, :1].set(params["b3"])

    return {"slab": slab, "biases": biases, "layout": layout}


# --------------------------------------------------------------------------
# Kernel
# --------------------------------------------------------------------------
def _make_critic_kernel(layout):
    f32 = jnp.float32
    P = layout["widths"]["P"]
    H1P = layout["widths"]["H1P"]
    H2P = layout["widths"]["H2P"]

    def kernel(obs_acts_ref, laser_ref, w_ref, b_ref, out_ref):
        wdt = w_ref.dtype

        def w(name):
            off, rows, width = layout[name]      # static python ints
            return w_ref[off:off + rows, :width]

        obs_acts = obs_acts_ref[...]             # already in wdt (wrapper cast)
        laser = laser_ref[...]

        # PreFC + ReLU (zero-padded columns stay exactly 0 after ReLU).
        pre = jnp.dot(laser, w("w_pre"), preferred_element_type=f32)
        pre = jnp.maximum(pre + b_ref[0:1, :P], 0.0)

        # FC1 on cat([obs, pre, acts]) == [obs,acts]@W1oa + pre@W1pre.
        # Sequential accumulation (v7x MRB in-place accumulate friendly).
        h1 = jnp.dot(obs_acts, w("w1_oa"), preferred_element_type=f32)
        h1 = h1 + jnp.dot(pre.astype(wdt), w("w1_pre"), preferred_element_type=f32)
        h1 = jnp.maximum(h1 + b_ref[1:2, :H1P], 0.0)

        # FC2 + ReLU.
        h2 = jnp.dot(h1.astype(wdt), w("w2"), preferred_element_type=f32)
        h2 = jnp.maximum(h2 + b_ref[2:3, :H2P], 0.0)

        # FC3: contract the lane dim of h2 against transposed W3 -> (8, TB).
        # Only row 0 is the real output; the other 7 rows come from zero rows
        # of the padded W3 slab section.
        out = lax.dot_general(
            w("w3t"), h2.astype(wdt),
            dimension_numbers=(((1,), (1,)), ((), ())),
            preferred_element_type=f32)
        out_ref[...] = (out + b_ref[3:4, 0:1]).astype(out_ref.dtype)

    return kernel


# --------------------------------------------------------------------------
# Batch tiling policy
# --------------------------------------------------------------------------
def _choose_batch_tiling(B, batch_tile):
    """Returns (tb, B_pad, nb).  tb is a multiple of 128 when nb > 1 (so the
    (8, tb) output block is lane-dense), and we keep nb >= 2 for big batches so
    v7x's two TensorCores both get work."""
    B8 = _round_up(B, 8)
    if B8 <= 256:
        return B8, B8, 1                      # single full-extent step
    cap = max(_round_up(batch_tile, 128), 128)
    half = _round_up(-(-B8 // 2), 128)        # aim for >= 2 grid steps
    tb = min(cap, half)
    B_pad = _round_up(B8, tb)
    return tb, B_pad, B_pad // tb


# --------------------------------------------------------------------------
# Wrapper
# --------------------------------------------------------------------------
def critic_forward(obs, acts, laser, packed, *, batch_tile=512):
    """obs [B, obs_dim], acts [B, act_dim], laser [B, las_dim] -> [B, 1] (f32)."""
    slab, biases, layout = packed["slab"], packed["biases"], packed["layout"]
    d = layout["dims"]
    P, H1P, H2P = (layout["widths"][k] for k in ("P", "H1P", "H2P"))
    B = obs.shape[0]

    # Merge obs/acts into one stream; cast activations to the slab dtype in the
    # wrapper (bf16 mode halves activation DMA bytes; kernel math stays f32).
    in_dtype = slab.dtype
    obs_acts = jnp.concatenate([obs, acts], axis=1).astype(in_dtype)
    laser = laser.astype(in_dtype)

    tb, B_pad, nb = _choose_batch_tiling(B, batch_tile)
    if B_pad != B:
        pad = ((0, B_pad - B), (0, 0))
        obs_acts = jnp.pad(obs_acts, pad)
        laser = jnp.pad(laser, pad)

    oa_dim = obs_acts.shape[1]
    las_dim = laser.shape[1]

    flops = 2 * B_pad * (
        d["las_dim"] * d["las_out_dim"]
        + (d["obs_dim"] + d["las_out_dim"] + d["act_dim"]) * d["hidden_dim"]
        + d["hidden_dim"] * d["second_hidden_dim"]
        + d["second_hidden_dim"] * d["out_dim"])
    act_item = jnp.dtype(in_dtype).itemsize
    slab_bytes = slab.shape[0] * slab.shape[1] * act_item
    bias_bytes = biases.size * 4
    bytes_accessed = (B_pad * (oa_dim + las_dim) * act_item
                      + 8 * B_pad * 4
                      + slab_bytes + bias_bytes)

    # VMEM budget: double-buffered activation tiles + params + intermediates,
    # with ~2x headroom. Never request the whole per-TC VMEM (64 MiB on v7x).
    footprint = (2 * tb * (oa_dim + las_dim) * act_item   # input double buffers
                 + 2 * 8 * tb * 4                          # output double buffer
                 + 2 * (slab_bytes + bias_bytes)           # params (worst case)
                 + 2 * tb * (P + H1P + H2P) * 4)           # live intermediates
    vmem_limit = int(min(max(2 * footprint, 4 * 1024 * 1024), 32 * 1024 * 1024))

    out = pl.pallas_call(
        _make_critic_kernel(layout),
        out_shape=jax.ShapeDtypeStruct((8, B_pad), jnp.float32),
        grid_spec=pltpu.PrefetchScalarGridSpec(
            num_scalar_prefetch=0,
            grid=(nb,),
            in_specs=[
                pl.BlockSpec((tb, oa_dim), lambda i: (i, 0)),
                pl.BlockSpec((tb, las_dim), lambda i: (i, 0)),
                # constant index_map -> fetched once, stays VMEM-resident.
                pl.BlockSpec(slab.shape, lambda i: (0, 0)),
                pl.BlockSpec(biases.shape, lambda i: (0, 0)),
            ],
            out_specs=pl.BlockSpec((8, tb), lambda i: (0, i)),
        ),
        compiler_params=pltpu.CompilerParams(
            dimension_semantics=("parallel",),
            vmem_limit_bytes=vmem_limit,
        ),
        cost_estimate=pl.CostEstimate(
            flops=int(flops), transcendentals=0,
            bytes_accessed=int(bytes_accessed)),
    )(obs_acts, laser, slab, biases)

    # Row 0 holds the real FC3 output; padded batch rows are discarded.
    return out[0, :B][:, None]


# --------------------------------------------------------------------------
# Pure-JAX reference of the PyTorch forward (for sanity check).
# --------------------------------------------------------------------------
def critic_reference(obs, acts, laser, params):
    pre = jax.nn.relu(laser @ params["w_pre"].T + params["b_pre"])
    combined = jnp.concatenate([obs, pre, acts], axis=1)
    h1 = jax.nn.relu(combined @ params["w1"].T + params["b1"])
    h2 = jax.nn.relu(h1 @ params["w2"].T + params["b2"])
    return h2 @ params["w3"].T + params["b3"]


if __name__ == "__main__":
    # Small shapes consistent with the module's constructor.
    n_agent = 2
    dim_observation = 16
    dim_action = 4
    dim_laser = 32
    las_output = 16
    hidden_layer = 32
    second_hidden_layer = 32

    key = jax.random.PRNGKey(0)
    k_params, k_obs, k_act, k_las = jax.random.split(key, 4)

    params, dims = init_critic_params(
        k_params, n_agent, dim_observation, dim_action, dim_laser,
        las_output, hidden_layer, second_hidden_layer)

    # ---- Test 1: tiny batch, f32 parameter slab, single grid step ----
    B = 8
    obs = jax.random.normal(k_obs, (B, dims["obs_dim"]), jnp.float32)
    acts = jax.random.normal(k_act, (B, dims["act_dim"]), jnp.float32)
    laser = jax.random.normal(k_las, (B, dims["las_dim"]), jnp.float32)

    packed_f32 = pack_critic_params(params, dims, param_dtype=jnp.float32)
    out = critic_forward(obs, acts, laser, packed_f32)
    jax.block_until_ready(out)
    ref = critic_reference(obs, acts, laser, params)
    assert out.shape == (B, 1)
    assert jnp.allclose(out, ref, atol=1e-5, rtol=1e-5), "f32 small-batch mismatch"

    # ---- Test 2: larger batch -> 2 grid steps (256-wide tiles) + batch pad ----
    B2 = 384
    kb = jax.random.PRNGKey(1)
    ko, ka, kl = jax.random.split(kb, 3)
    obs2 = jax.random.normal(ko, (B2, dims["obs_dim"]), jnp.float32)
    acts2 = jax.random.normal(ka, (B2, dims["act_dim"]), jnp.float32)
    laser2 = jax.random.normal(kl, (B2, dims["las_dim"]), jnp.float32)

    out2 = critic_forward(obs2, acts2, laser2, packed_f32, batch_tile=512)
    jax.block_until_ready(out2)
    ref2 = critic_reference(obs2, acts2, laser2, params)
    assert out2.shape == (B2, 1)
    assert jnp.allclose(out2, ref2, atol=1e-4, rtol=1e-4), "f32 gridded mismatch"

    # ---- Test 3: bf16 slab + bf16 activation DMA, f32 accumulate/epilogue ----
    packed_bf16 = pack_critic_params(params, dims, param_dtype=jnp.bfloat16)
    out3 = critic_forward(obs2, acts2, laser2, packed_bf16, batch_tile=512)
    jax.block_until_ready(out3)
    assert out3.shape == (B2, 1)
    assert bool(jnp.all(jnp.isfinite(out3)))
    assert jnp.allclose(out3, ref2, atol=1e-1, rtol=1e-1), "bf16 mismatch vs f32 ref"

    print("KERNEL_OK")
</pallas_src>

<mosaic_0001>
module attributes {stable_mosaic.version = 11 : i64} {
  func.func @kernel(%arg0: i32, %arg1: memref<8x40xf32, #tpu.memory_space<vmem>>, %arg2: memref<8x64xf32, #tpu.memory_space<vmem>>, %arg3: memref<384x128xf32, #tpu.memory_space<vmem>>, %arg4: memref<8x128xf32, #tpu.memory_space<vmem>>, %arg5: memref<8x8xf32, #tpu.memory_space<vmem>>) attributes {dimension_semantics = [#tpu.dimension_semantics<parallel>], iteration_bounds = array<i64: 1>, scalar_prefetch = 0 : i64, scratch_operands = 0 : i64, tpu.core_type = #tpu.core_type<tc>, window_params = [{transform_indices = @transform_0, window_bounds = array<i64: 8, 40>}, {transform_indices = @transform_1, window_bounds = array<i64: 8, 64>}, {pipeline_mode = #tpu.pipeline_mode<synchronous>, transform_indices = @transform_2, window_bounds = array<i64: 384, 128>}, {pipeline_mode = #tpu.pipeline_mode<synchronous>, transform_indices = @transform_3, window_bounds = array<i64: 8, 128>}, {transform_indices = @transform_4, window_bounds = array<i64: 8, 8>}]} {
    %c0 = arith.constant 0 : index
    %c0_0 = arith.constant 0 : index
    %0 = vector.load %arg1[%c0, %c0_0] : memref<8x40xf32, #tpu.memory_space<vmem>>, vector<8x40xf32>
    %c0_1 = arith.constant 0 : index
    %c0_2 = arith.constant 0 : index
    %1 = vector.load %arg2[%c0_1, %c0_2] : memref<8x64xf32, #tpu.memory_space<vmem>>, vector<8x64xf32>
    %c0_3 = arith.constant 0 : index
    %c0_4 = arith.constant 0 : index
    %2 = vector.load %arg3[%c0_3, %c0_4] : memref<384x128xf32, #tpu.memory_space<vmem>>, vector<64x128xf32>
    %cst = arith.constant dense<0.000000e+00> : vector<8x128xf32>
    %3 = tpu.matmul %1, %2, %cst {dimension_numbers = #tpu.dot_dimension_numbers<[1], [0], [0], [1], [0, 0, 1, 1], [], []>} : vector<8x64xf32>, vector<64x128xf32>, vector<8x128xf32> -> vector<8x128xf32>
    %c0_5 = arith.constant 0 : index
    %c0_6 = arith.constant 0 : index
    %4 = vector.load %arg4[%c0_5, %c0_6] : memref<8x128xf32, #tpu.memory_space<vmem>>, vector<1x128xf32>
    %5 = vector.broadcast %4 : vector<1x128xf32> to vector<8x128xf32>
    %6 = arith.addf %3, %5 : vector<8x128xf32>
    %cst_7 = arith.constant 0.000000e+00 : f32
    %7 = vector.broadcast %cst_7 : f32 to vector<8x128xf32>
    %8 = arith.maximumf %6, %7 : vector<8x128xf32>
    %c64 = arith.constant 64 : index
    %c0_8 = arith.constant 0 : index
    %9 = vector.load %arg3[%c64, %c0_8] : memref<384x128xf32, #tpu.memory_space<vmem>>, vector<40x128xf32>
    %cst_9 = arith.constant dense<0.000000e+00> : vector<8x128xf32>
    %10 = tpu.matmul %0, %9, %cst_9 {dimension_numbers = #tpu.dot_dimension_numbers<[1], [0], [0], [1], [0, 0, 1, 1], [], []>} : vector<8x40xf32>, vector<40x128xf32>, vector<8x128xf32> -> vector<8x128xf32>
    %c112 = arith.constant 112 : index
    %c0_10 = arith.constant 0 : index
    %11 = vector.load %arg3[%c112, %c0_10] : memref<384x128xf32, #tpu.memory_space<vmem>>, vector<128x128xf32>
    %cst_11 = arith.constant dense<0.000000e+00> : vector<8x128xf32>
    %12 = tpu.matmul %8, %11, %cst_11 {dimension_numbers = #tpu.dot_dimension_numbers<[1], [0], [0], [1], [0, 0, 1, 1], [], []>} : vector<8x128xf32>, vector<128x128xf32>, vector<8x128xf32> -> vector<8x128xf32>
    %13 = arith.addf %10, %12 : vector<8x128xf32>
    %c1 = arith.constant 1 : index
    %c0_12 = arith.constant 0 : index
    %14 = vector.load %arg4[%c1, %c0_12] : memref<8x128xf32, #tpu.memory_space<vmem>>, vector<1x128xf32>
    %15 = vector.broadcast %14 : vector<1x128xf32> to vector<8x128xf32>
    %16 = arith.addf %13, %15 : vector<8x128xf32>
    %cst_13 = arith.constant 0.000000e+00 : f32
    %17 = vector.broadcast %cst_13 : f32 to vector<8x128xf32>
    %18 = arith.maximumf %16, %17 : vector<8x128xf32>
    %c240 = arith.constant 240 : index
    %c0_14 = arith.constant 0 : index
    %19 = vector.load %arg3[%c240, %c0_14] : memref<384x128xf32, #tpu.memory_space<vmem>>, vector<128x128xf32>
    %cst_15 = arith.constant dense<0.000000e+00> : vector<8x128xf32>
    %20 = tpu.matmul %18, %19, %cst_15 {dimension_numbers = #tpu.dot_dimension_numbers<[1], [0], [0], [1], [0, 0, 1, 1], [], []>} : vector<8x128xf32>, vector<128x128xf32>, vector<8x128xf32> -> vector<8x128xf32>
    %c2 = arith.constant 2 : index
    %c0_16 = arith.constant 0 : index
    %21 = vector.load %arg4[%c2, %c0_16] : memref<8x128xf32, #tpu.memory_space<vmem>>, vector<1x128xf32>
    %22 = vector.broadcast %21 : vector<1x128xf32> to vector<8x128xf32>
    %23 = arith.addf %20, %22 : vector<8x128xf32>
    %cst_17 = arith.constant 0.000000e+00 : f32
    %24 = vector.broadcast %cst_17 : f32 to vector<8x128xf32>
    %25 = arith.maximumf %23, %24 : vector<8x128xf32>
    %c368 = arith.constant 368 : index
    %c0_18 = arith.constant 0 : index
    %26 = vector.load %arg3[%c368, %c0_18] : memref<384x128xf32, #tpu.memory_space<vmem>>, vector<8x128xf32>
    %cst_19 = arith.constant dense<0.000000e+00> : vector<8x8xf32>
    %27 = tpu.matmul %26, %25, %cst_19 {dimension_numbers = #tpu.dot_dimension_numbers<[1], [1], [0], [0], [0, 0, 1, 0], [], []>} : vector<8x128xf32>, vector<8x128xf32>, vector<8x8xf32> -> vector<8x8xf32>
    %c3 = arith.constant 3 : index
    %c0_20 = arith.constant 0 : index
    %28 = vector.load %arg4[%c3, %c0_20] : memref<8x128xf32, #tpu.memory_space<vmem>>, vector<1x1xf32>
    %29 = vector.broadcast %28 : vector<1x1xf32> to vector<8x8xf32>
    %30 = arith.addf %27, %29 : vector<8x8xf32>
    %c0_21 = arith.constant 0 : index
    %c0_22 = arith.constant 0 : index
    %31 = vector.load %arg5[%c0_21, %c0_22] : memref<8x8xf32, #tpu.memory_space<vmem>>, vector<8x8xf32>
    tpu.vector_store %arg5[%c0_21, %c0_22], %30 {strides = array<i32>} : memref<8x8xf32, #tpu.memory_space<vmem>>, vector<8x8xf32>,
    return
  }
  func.func @transform_0(%arg0: i32) -> (i32, i32) {
    %c0_i32 = arith.constant 0 : i32
    %c0_i32_0 = arith.constant 0 : i32
    return %arg0, %c0_i32 : i32, i32
  }
  func.func @transform_1(%arg0: i32) -> (i32, i32) {
    %c0_i32 = arith.constant 0 : i32
    %c0_i32_0 = arith.constant 0 : i32
    return %arg0, %c0_i32 : i32, i32
  }
  func.func @transform_2(%arg0: i32) -> (i32, i32) {
    %c0_i32 = arith.constant 0 : i32
    %c0_i32_0 = arith.constant 0 : i32
    %c0_i32_1 = arith.constant 0 : i32
    return %c0_i32, %c0_i32_0 : i32, i32
  }
  func.func @transform_3(%arg0: i32) -> (i32, i32) {
    %c0_i32 = arith.constant 0 : i32
    %c0_i32_0 = arith.constant 0 : i32
    %c0_i32_1 = arith.constant 0 : i32
    return %c0_i32, %c0_i32_0 : i32, i32
  }
  func.func @transform_4(%arg0: i32) -> (i32, i32) {
    %c0_i32 = arith.constant 0 : i32
    %c0_i32_0 = arith.constant 0 : i32
    return %c0_i32, %arg0 : i32, i32
  }
}

</mosaic_0001>

<llo_original>
// kernel: tpu_custom_call.1
$region0: #{tpu_custom_call.1}
  #allocation0 [shape = 'u32[]', space=smem, size = 0x4, offset = 0x4, fixed_abs, tag = 'smem constant byte address 0x4 - core index']
  #allocation1 [shape = 'u32[144,128]{1,0:T(1,128)}', space=vmem, size = 0x12000, scoped, tag = 'internal scratch']
  %s0 = inlined_call_operand.hbm [shape: f32[8,40], index: 0, kind: input, shape index: {}]
  %s1 = inlined_call_operand.hbm [shape: f32[8,64], index: 1, kind: input, shape index: {}]
  %s2 = inlined_call_operand.hbm [shape: f32[384,128], index: 2, kind: input, shape index: {}]
  %s3 = inlined_call_operand.vmem [shape: f32[8,128], index: 3, kind: input, shape index: {}]
  %s4 = inlined_call_operand.hbm [shape: f32[8,8], index: 4, kind: output, shape index: {}]
  %s5 = sld [smem:[#allocation0]]
  $region38: #{tpu_custom_call.1} parent=0
    _
  %s7 = ssub.s32 1, %s5
  %s8 = scalar_select 0, %s7, %s5
  $region1: #{tpu_custom_call.1} parent=0
    #allocation2 [shape = 'u8[4096]{0}', space=vmem, size = 0x1000, scoped, tag = 'input window, operand 0, single buffered']
    #allocation3 [shape = 's32[1]{0}', space=sflag, size = 0x4, scoped, tag = 'scoped memory for tpu_custom_call.1']
    #allocation4 [shape = 's32[1]{0}', space=sflag, size = 0x4, scoped, tag = 'scoped memory for tpu_custom_call.1']
    #allocation5 [shape = 'u8[4096]{0}', space=vmem, size = 0x1000, scoped, tag = 'input window, operand 1, single buffered']
    #allocation6 [shape = 's32[1]{0}', space=sflag, size = 0x4, scoped, tag = 'scoped memory for tpu_custom_call.1']
    #allocation7 [shape = 'u8[196608]{0}', space=vmem, size = 0x30000, scoped, tag = 'input window, operand 2, single buffered']
    #allocation8 [shape = 'u8[4096]{0}', space=vmem, size = 0x1000, scoped, tag = 'output window, operand 0, single buffered']
    %9 = vsyncpa [#allocation3], 0
    %10 = vsyncpa [#allocation6], 0
    %11 = vsyncpa [#allocation4], 0
    // Predicated region
    $region2: #{tpu_custom_call.1} parent=1 // pred_check
      _
    $region3: #{tpu_custom_call.1} parent=1 // pred_check_branch
      %13 = sbr.rel (0) target = $region5
    $region4: #{tpu_custom_call.1} parent=1 // pred_region
      %s15 = ssub.s32 128, 128
      %16 = vsyncadd [#allocation3], %s15
      %s18 = sshll.u32 [#allocation2], 4
      %s19 = int_to_ptr.vmem [resolvable:$true] %s18
      %21 = dma.hbm_to_vmem [thread:$0]  %s0, 128, %s19, [#allocation3]
    $region5: #{tpu_custom_call.1} parent=1 // pred_fallthru
      _
    // Predicated region
    $region6: #{tpu_custom_call.1} parent=1 // pred_check
      _
    $region7: #{tpu_custom_call.1} parent=1 // pred_check_branch
      %23 = sbr.rel (0) target = $region9
    $region8: #{tpu_custom_call.1} parent=1 // pred_region
      %s25 = ssub.s32 128, 128
      %26 = vsyncadd [#allocation6], %s25
      %s28 = sshll.u32 [#allocation5], 4
      %s29 = int_to_ptr.vmem [resolvable:$true] %s28
      %31 = dma.hbm_to_vmem [thread:$0]  %s1, 128, %s29, [#allocation6]
    $region9: #{tpu_custom_call.1} parent=1 // pred_fallthru
      _
    // Predicated region
    $region10: #{tpu_custom_call.1} parent=1 // pred_check
      _
    $region11: #{tpu_custom_call.1} parent=1 // pred_check_branch
      %33 = sbr.rel (0) target = $region13
    $region12: #{tpu_custom_call.1} parent=1 // pred_region
      %s35 = ssub.s32 6144, 6144
      %36 = vsyncadd [#allocation6], %s35
      %s37 = sshll.u32 [#allocation7], 4
      %s38 = int_to_ptr.vmem [resolvable:$true] %s37
      %43 = dma.hbm_to_vmem [thread:$0]  %s2, 6144, %s38, [#allocation6], 128, 128, 8
    $region13: #{tpu_custom_call.1} parent=1 // pred_fallthru
      _
    // Predicated region
    $region14: #{tpu_custom_call.1} parent=1 // pred_check
      _
    $region15: #{tpu_custom_call.1} parent=1 // pred_check_branch
      %45 = sbr.rel (0) target = $region17
    $region16: #{tpu_custom_call.1} parent=1 // pred_region
      _
    $region17: #{tpu_custom_call.1} parent=1 // pred_fallthru
      _
    // Predicated region
    $region18: #{tpu_custom_call.1} parent=1 // pred_check
      _
    $region19: #{tpu_custom_call.1} parent=1 // pred_check_branch
      %47 = sbr.rel (0) target = $region21
    $region20: #{tpu_custom_call.1} parent=1 // pred_region
      %48 = dma.done [#allocation3], 128
    $region21: #{tpu_custom_call.1} parent=1 // pred_fallthru
      _
    // Predicated region
    $region22: #{tpu_custom_call.1} parent=1 // pred_check
      _
    $region23: #{tpu_custom_call.1} parent=1 // pred_check_branch
      %50 = sbr.rel (0) target = $region25
    $region24: #{tpu_custom_call.1} parent=1 // pred_region
      %51 = dma.done [#allocation6], 128
    $region25: #{tpu_custom_call.1} parent=1 // pred_fallthru
      _
    // Predicated region
    $region26: #{tpu_custom_call.1} parent=1 // pred_check
      _
    $region27: #{tpu_custom_call.1} parent=1 // pred_check_branch
      %53 = sbr.rel (0) target = $region29
    $region28: #{tpu_custom_call.1} parent=1 // pred_region
      %54 = dma.done [#allocation6], 6144
    $region29: #{tpu_custom_call.1} parent=1 // pred_fallthru
      _
    %v55 = vld [vmem:[#allocation2] sm:$0xff]
    %v56 = vld [vmem:[#allocation5] sm:$0xff]
    %v57 = vld [vmem:[#allocation7] sm:$0xff]
    %v58 = vld [vmem:[#allocation7 + $0x8] sm:$0xff]
    %v59 = vld [vmem:[#allocation7 + $0x10] sm:$0xff]
    %v60 = vld [vmem:[#allocation7 + $0x18] sm:$0xff]
    %v61 = vld [vmem:[#allocation7 + $0x20] sm:$0xff]
    %v62 = vld [vmem:[#allocation7 + $0x28] sm:$0xff]
    %v63 = vld [vmem:[#allocation7 + $0x30] sm:$0xff]
    %v64 = vld [vmem:[#allocation7 + $0x38] sm:$0xff]
    %v65 = vld [vmem:[%s3] sm:$0x1]
    %v66 = vlaneseq
    %v67 = vshrl.u32 %v66, 7
    %v68 = vsub.s32 0, %v67
    %v69 = vrot.slane %v65, %v68
    %vm70 = vcmask 523264
    %v72 = vsel %vm70, %v56, 0
    %74 = vmatprep.subr.mxu0 0.0
    %75 = vmatpush1.msra.mxu0 %v57
    %76 = vmatprep.subr.mxu0 0.0
    %77 = vmatpush1.msra.mxu0 %v58
    %78 = vmatprep.subr.mxu0 0.0
    %79 = vmatpush1.msra.mxu0 %v59
    %80 = vmatprep.subr.mxu0 0.0
    %81 = vmatpush1.msra.mxu0 %v60
    %82 = vmatprep.subr.mxu0 0.0
    %83 = vmatpush1.msra.mxu0 %v61
    %84 = vmatprep.subr.mxu0 0.0
    %85 = vmatpush1.msra.mxu0 %v62
    %86 = vmatprep.subr.mxu0 0.0
    %87 = vmatpush1.msra.mxu0 %v63
    %88 = vmatprep.subr.mxu0 0.0
    %89 = vmatpush1.msra.mxu0 %v64
    %90 = vmatprep.subr.mxu0 0.0
    %91 = vmatpush1.msra.mxu0 0.0
    %92 = vmatprep.subr.mxu0 0.0
    %93 = vmatpush1.msra.mxu0 0.0
    %94 = vmatprep.subr.mxu0 0.0
    %95 = vmatpush1.msra.mxu0 0.0
    %96 = vmatprep.subr.mxu0 0.0
    %97 = vmatpush1.msra.mxu0 0.0
    %98 = vmatprep.subr.mxu0 0.0
    %99 = vmatpush1.msra.mxu0 0.0
    %100 = vmatprep.subr.mxu0 0.0
    %101 = vmatpush1.msra.mxu0 0.0
    %102 = vmatprep.subr.mxu0 0.0
    %103 = vmatpush1.msra.mxu0 0.0
    %104 = vmatprep.subr.mxu0 0.0
    %105 = vmatpush1.msra.mxu0 0.0
    %106 = vmatprep.subr.mxu0 0.0
    %107 = vmatpush1.msra.mxu0 0.0
    %108 = vmatprep.subr.mxu0 0.0
    %109 = vmatpush1.msra.mxu0 0.0
    %110 = vmatprep.subr.mxu0 0.0
    %111 = vmatpush1.msra.mxu0 0.0
    %112 = vmatprep.subr.mxu0 0.0
    %113 = vmatpush1.msra.mxu0 0.0
    %114 = vmatprep.subr.mxu0 0.0
    %115 = vmatpush1.msra.mxu0 0.0
    %116 = vmatprep.subr.mxu0 0.0
    %117 = vmatpush1.msra.mxu0 0.0
    %118 = vmatprep.subr.mxu0 0.0
    %119 = vmatpush1.msra.mxu0 0.0
    %120 = vmatprep.subr.mxu0 0.0
    %121 = vmatpush1.msra.mxu0 0.0
    %122 = vmatprep.subr.mxu0 0.0
    %123 = vmatpush1.msra.mxu0 0.0
    %124 = vmatprep.subr.mxu0 0.0
    %125 = vmatpush1.msra.mxu0 0.0
    %126 = vmatprep.subr.mxu0 0.0
    %127 = vmatpush1.msra.mxu0 0.0
    %128 = vmatprep.subr.mxu0 0.0
    %129 = vmatpush1.msra.mxu0 0.0
    %130 = vmatprep.subr.mxu0 0.0
    %131 = vmatpush1.msra.mxu0 0.0
    %132 = vmatprep.subr.mxu0 0.0
    %133 = vmatpush1.msra.mxu0 0.0
    %134 = vmatprep.subr.mxu0 0.0
    %135 = vmatpush1.msra.mxu0 0.0
    %136 = vmatprep.subr.mxu0 0.0
    %137 = vmatpush1.msra.mxu0 0.0
    %138 = vmatprep.mubr.f32.mxu0 0.0
    %139 = vmatmul.mubr.f32.gmra.mrb[0].mxu0 %v72
    %v140 = vpop.f32.mrb[0].mxu0
    %v141 = vadd.f32 %v69, %v140
    %v142 = vpop.f32.mrb[0].mxu0
    %143 = vdwg.mxu0
    %v144 = vmax.f32 %v141, 0.0
    %v145 = vld [vmem:[#allocation7 + $0x40] sm:$0xff]
    %v146 = vld [vmem:[#allocation7 + $0x48] sm:$0xff]
    %v147 = vld [vmem:[#allocation7 + $0x50] sm:$0xff]
    %v148 = vld [vmem:[#allocation7 + $0x58] sm:$0xff]
    %v149 = vld [vmem:[#allocation7 + $0x60] sm:$0xff]
    %v150 = vld [vmem:[#allocation7 + $0x70] sm:$0xff]
    %v151 = vld [vmem:[#allocation7 + $0x78] sm:$0xff]
    %v152 = vld [vmem:[#allocation7 + $0x80] sm:$0xff]
    %v153 = vld [vmem:[#allocation7 + $0x88] sm:$0xff]
    %v154 = vld [vmem:[#allocation7 + $0x90] sm:$0xff]
    %v155 = vld [vmem:[#allocation7 + $0x98] sm:$0xff]
    %v156 = vld [vmem:[#allocation7 + $0xa0] sm:$0xff]
    %v157 = vld [vmem:[#allocation7 + $0xa8] sm:$0xff]
    %v158 = vld [vmem:[#allocation7 + $0xb0] sm:$0xff]
    %v159 = vld [vmem:[#allocation7 + $0xb8] sm:$0xff]
    %v160 = vld [vmem:[#allocation7 + $0xc0] sm:$0xff]
    %v161 = vld [vmem:[#allocation7 + $0xc8] sm:$0xff]
    %v162 = vld [vmem:[#allocation7 + $0xd0] sm:$0xff]
    %v163 = vld [vmem:[#allocation7 + $0xd8] sm:$0xff]
    %v164 = vld [vmem:[#allocation7 + $0xe0] sm:$0xff]
    %v165 = vld [vmem:[#allocation7 + $0xe8] sm:$0xff]
    %166 = vmatprep.subr.mxu0 0.0
    %167 = vmatpush1.msra.mxu0 %v150
    %168 = vmatprep.subr.mxu0 0.0
    %169 = vmatpush1.msra.mxu0 %v151
    %170 = vmatprep.subr.mxu0 0.0
    %171 = vmatpush1.msra.mxu0 %v152
    %172 = vmatprep.subr.mxu0 0.0
    %173 = vmatpush1.msra.mxu0 %v153
    %174 = vmatprep.subr.mxu0 0.0
    %175 = vmatpush1.msra.mxu0 %v154
    %176 = vmatprep.subr.mxu0 0.0
    %177 = vmatpush1.msra.mxu0 %v155
    %178 = vmatprep.subr.mxu0 0.0
    %179 = vmatpush1.msra.mxu0 %v156
    %180 = vmatprep.subr.mxu0 0.0
    %181 = vmatpush1.msra.mxu0 %v157
    %182 = vmatprep.subr.mxu0 0.0
    %183 = vmatpush1.msra.mxu0 %v158
    %184 = vmatprep.subr.mxu0 0.0
    %185 = vmatpush1.msra.mxu0 %v159
    %186 = vmatprep.subr.mxu0 0.0
    %187 = vmatpush1.msra.mxu0 %v160
    %188 = vmatprep.subr.mxu0 0.0
    %189 = vmatpush1.msra.mxu0 %v161
    %190 = vmatprep.subr.mxu0 0.0
    %191 = vmatpush1.msra.mxu0 %v162
    %192 = vmatprep.subr.mxu0 0.0
    %193 = vmatpush1.msra.mxu0 %v163
    %194 = vmatprep.subr.mxu0 0.0
    %195 = vmatpush1.msra.mxu0 %v164
    %196 = vmatprep.subr.mxu0 0.0
    %197 = vmatpush1.msra.mxu0 %v165
    %198 = vmatprep.subr.mxu0 0.0
    %199 = vmatpush1.msra.mxu0 0.0
    %200 = vmatprep.subr.mxu0 0.0
    %201 = vmatpush1.msra.mxu0 0.0
    %202 = vmatprep.subr.mxu0 0.0
    %203 = vmatpush1.msra.mxu0 0.0
    %204 = vmatprep.subr.mxu0 0.0
    %205 = vmatpush1.msra.mxu0 0.0
    %206 = vmatprep.subr.mxu0 0.0
    %207 = vmatpush1.msra.mxu0 0.0
    %208 = vmatprep.subr.mxu0 0.0
    %209 = vmatpush1.msra.mxu0 0.0
    %210 = vmatprep.subr.mxu0 0.0
    %211 = vmatpush1.msra.mxu0 0.0
    %212 = vmatprep.subr.mxu0 0.0
    %213 = vmatpush1.msra.mxu0 0.0
    %214 = vmatprep.subr.mxu0 0.0
    %215 = vmatpush1.msra.mxu0 0.0
    %216 = vmatprep.subr.mxu0 0.0
    %217 = vmatpush1.msra.mxu0 0.0
    %218 = vmatprep.subr.mxu0 0.0
    %219 = vmatpush1.msra.mxu0 0.0
    %220 = vmatprep.subr.mxu0 0.0
    %221 = vmatpush1.msra.mxu0 0.0
    %222 = vmatprep.subr.mxu0 0.0
    %223 = vmatpush1.msra.mxu0 0.0
    %224 = vmatprep.subr.mxu0 0.0
    %225 = vmatpush1.msra.mxu0 0.0
    %226 = vmatprep.subr.mxu0 0.0
    %227 = vmatpush1.msra.mxu0 0.0
    %228 = vmatprep.subr.mxu0 0.0
    %229 = vmatpush1.msra.mxu0 0.0
    %230 = vmatprep.mubr.f32.mxu0 0.0
    %231 = vmatmul.mubr.f32.gmra.mrb[0].mxu0 %v144
    %v232 = vpop.f32.mrb[0].mxu0
    %v233 = vadd.f32 0.0, %v232
    %v234 = vpop.f32.mrb[0].mxu0
    %235 = vdwg.mxu0
    %vm236 = vcmask 326656
    %v238 = vsel %vm236, %v55, 0
    %240 = vmatprep.subr.mxu0 0.0
    %241 = vmatpush1.msra.mxu0 %v145
    %242 = vmatprep.subr.mxu0 0.0
    %243 = vmatpush1.msra.mxu0 %v146
    %244 = vmatprep.subr.mxu0 0.0
    %245 = vmatpush1.msra.mxu0 %v147
    %246 = vmatprep.subr.mxu0 0.0
    %247 = vmatpush1.msra.mxu0 %v148
    %248 = vmatprep.subr.mxu0 0.0
    %249 = vmatpush1.msra.mxu0 %v149
    %250 = vmatprep.subr.mxu0 0.0
    %251 = vmatpush1.msra.mxu0 0.0
    %252 = vmatprep.subr.mxu0 0.0
    %253 = vmatpush1.msra.mxu0 0.0
    %254 = vmatprep.subr.mxu0 0.0
    %255 = vmatpush1.msra.mxu0 0.0
    %256 = vmatprep.subr.mxu0 0.0
    %257 = vmatpush1.msra.mxu0 0.0
    %258 = vmatprep.subr.mxu0 0.0
    %259 = vmatpush1.msra.mxu0 0.0
    %260 = vmatprep.subr.mxu0 0.0
    %261 = vmatpush1.msra.mxu0 0.0
    %262 = vmatprep.subr.mxu0 0.0
    %263 = vmatpush1.msra.mxu0 0.0
    %264 = vmatprep.subr.mxu0 0.0
    %265 = vmatpush1.msra.mxu0 0.0
    %266 = vmatprep.subr.mxu0 0.0
    %267 = vmatpush1.msra.mxu0 0.0
    %268 = vmatprep.subr.mxu0 0.0
    %269 = vmatpush1.msra.mxu0 0.0
    %270 = vmatprep.subr.mxu0 0.0
    %271 = vmatpush1.msra.mxu0 0.0
    %272 = vmatprep.subr.mxu0 0.0
    %273 = vmatpush1.msra.mxu0 0.0
    %274 = vmatprep.subr.mxu0 0.0
    %275 = vmatpush1.msra.mxu0 0.0
    %276 = vmatprep.subr.mxu0 0.0
    %277 = vmatpush1.msra.mxu0 0.0
    %278 = vmatprep.subr.mxu0 0.0
    %279 = vmatpush1.msra.mxu0 0.0
    %280 = vmatprep.subr.mxu0 0.0
    %281 = vmatpush1.msra.mxu0 0.0
    %282 = vmatprep.subr.mxu0 0.0
    %283 = vmatpush1.msra.mxu0 0.0
    %284 = vmatprep.subr.mxu0 0.0
    %285 = vmatpush1.msra.mxu0 0.0
    %286 = vmatprep.subr.mxu0 0.0
    %287 = vmatpush1.msra.mxu0 0.0
    %288 = vmatprep.subr.mxu0 0.0
    %289 = vmatpush1.msra.mxu0 0.0
    %290 = vmatprep.subr.mxu0 0.0
    %291 = vmatpush1.msra.mxu0 0.0
    %292 = vmatprep.subr.mxu0 0.0
    %293 = vmatpush1.msra.mxu0 0.0
    %294 = vmatprep.subr.mxu0 0.0
    %295 = vmatpush1.msra.mxu0 0.0
    %296 = vmatprep.subr.mxu0 0.0
    %297 = vmatpush1.msra.mxu0 0.0
    %298 = vmatprep.subr.mxu0 0.0
    %299 = vmatpush1.msra.mxu0 0.0
    %300 = vmatprep.subr.mxu0 0.0
    %301 = vmatpush1.msra.mxu0 0.0
    %302 = vmatprep.subr.mxu0 0.0
    %303 = vmatpush1.msra.mxu0 0.0
    %304 = vmatprep.mubr.f32.mxu0 0.0
    %305 = vmatmul.mubr.f32.gmra.mrb[0].mxu0 %v238
    %v306 = vpop.f32.mrb[0].mxu0
    %v307 = vadd.f32 %v233, %v306
    %v308 = vpop.f32.mrb[0].mxu0
    %309 = vdwg.mxu0
    %v310 = vld [vmem:[%s3 + $0x1] sm:$0x1]
    %v311 = vlaneseq
    %v312 = vshrl.u32 %v311, 7
    %v313 = vsub.s32 0, %v312
    %v314 = vrot.slane %v310, %v313
    %v315 = vadd.f32 %v307, %v314
    %v316 = vmax.f32 %v315, 0.0
    %v317 = vld [vmem:[#allocation7 + $0xf0] sm:$0xff]
    %v318 = vld [vmem:[#allocation7 + $0xf8] sm:$0xff]
    %v319 = vld [vmem:[#allocation7 + $0x100] sm:$0xff]
    %v320 = vld [vmem:[#allocation7 + $0x108] sm:$0xff]
    %v321 = vld [vmem:[#allocation7 + $0x110] sm:$0xff]
    %v322 = vld [vmem:[#allocation7 + $0x118] sm:$0xff]
    %v323 = vld [vmem:[#allocation7 + $0x120] sm:$0xff]
    %v324 = vld [vmem:[#allocation7 + $0x128] sm:$0xff]
    %v325 = vld [vmem:[#allocation7 + $0x130] sm:$0xff]
    %v326 = vld [vmem:[#allocation7 + $0x138] sm:$0xff]
    %v327 = vld [vmem:[#allocation7 + $0x140] sm:$0xff]
    %v328 = vld [vmem:[#allocation7 + $0x148] sm:$0xff]
    %v329 = vld [vmem:[#allocation7 + $0x150] sm:$0xff]
    %v330 = vld [vmem:[#allocation7 + $0x158] sm:$0xff]
    %v331 = vld [vmem:[#allocation7 + $0x160] sm:$0xff]
    %v332 = vld [vmem:[#allocation7 + $0x168] sm:$0xff]
    %v333 = vld [vmem:[%s3 + $0x2] sm:$0x1]
    %v334 = vlaneseq
    %v335 = vshrl.u32 %v334, 7
    %v336 = vsub.s32 0, %v335
    %v337 = vrot.slane %v333, %v336
    %338 = vmatprep.subr.mxu0 0.0
    %339 = vmatpush1.msra.mxu0 %v317
    %340 = vmatprep.subr.mxu0 0.0
    %341 = vmatpush1.msra.mxu0 %v318
    %342 = vmatprep.subr.mxu0 0.0
    %343 = vmatpush1.msra.mxu0 %v319
    %344 = vmatprep.subr.mxu0 0.0
    %345 = vmatpush1.msra.mxu0 %v320
    %346 = vmatprep.subr.mxu0 0.0
    %347 = vmatpush1.msra.mxu0 %v321
    %348 = vmatprep.subr.mxu0 0.0
    %349 = vmatpush1.msra.mxu0 %v322
    %350 = vmatprep.subr.mxu0 0.0
    %351 = vmatpush1.msra.mxu0 %v323
    %352 = vmatprep.subr.mxu0 0.0
    %353 = vmatpush1.msra.mxu0 %v324
    %354 = vmatprep.subr.mxu0 0.0
    %355 = vmatpush1.msra.mxu0 %v325
    %356 = vmatprep.subr.mxu0 0.0
    %357 = vmatpush1.msra.mxu0 %v326
    %358 = vmatprep.subr.mxu0 0.0
    %359 = vmatpush1.msra.mxu0 %v327
    %360 = vmatprep.subr.mxu0 0.0
    %361 = vmatpush1.msra.mxu0 %v328
    %362 = vmatprep.subr.mxu0 0.0
    %363 = vmatpush1.msra.mxu0 %v329
    %364 = vmatprep.subr.mxu0 0.0
    %365 = vmatpush1.msra.mxu0 %v330
    %366 = vmatprep.subr.mxu0 0.0
    %367 = vmatpush1.msra.mxu0 %v331
    %368 = vmatprep.subr.mxu0 0.0
    %369 = vmatpush1.msra.mxu0 %v332
    %370 = vmatprep.subr.mxu0 0.0
    %371 = vmatpush1.msra.mxu0 0.0
    %372 = vmatprep.subr.mxu0 0.0
    %373 = vmatpush1.msra.mxu0 0.0
    %374 = vmatprep.subr.mxu0 0.0
    %375 = vmatpush1.msra.mxu0 0.0
    %376 = vmatprep.subr.mxu0 0.0
    %377 = vmatpush1.msra.mxu0 0.0
    %378 = vmatprep.subr.mxu0 0.0
    %379 = vmatpush1.msra.mxu0 0.0
    %380 = vmatprep.subr.mxu0 0.0
    %381 = vmatpush1.msra.mxu0 0.0
    %382 = vmatprep.subr.mxu0 0.0
    %383 = vmatpush1.msra.mxu0 0.0
    %384 = vmatprep.subr.mxu0 0.0
    %385 = vmatpush1.msra.mxu0 0.0
    %386 = vmatprep.subr.mxu0 0.0
    %387 = vmatpush1.msra.mxu0 0.0
    %388 = vmatprep.subr.mxu0 0.0
    %389 = vmatpush1.msra.mxu0 0.0
    %390 = vmatprep.subr.mxu0 0.0
    %391 = vmatpush1.msra.mxu0 0.0
    %392 = vmatprep.subr.mxu0 0.0
    %393 = vmatpush1.msra.mxu0 0.0
    %394 = vmatprep.subr.mxu0 0.0
    %395 = vmatpush1.msra.mxu0 0.0
    %396 = vmatprep.subr.mxu0 0.0
    %397 = vmatpush1.msra.mxu0 0.0
    %398 = vmatprep.subr.mxu0 0.0
    %399 = vmatpush1.msra.mxu0 0.0
    %400 = vmatprep.subr.mxu0 0.0
    %401 = vmatpush1.msra.mxu0 0.0
    %402 = vmatprep.mubr.f32.mxu0 0.0
    %403 = vmatmul.mubr.f32.gmra.mrb[0].mxu0 %v316
    %v404 = vpop.f32.mrb[0].mxu0
    %v405 = vadd.f32 %v337, %v404
    %v406 = vpop.f32.mrb[0].mxu0
    %407 = vdwg.mxu0
    %v408 = vmax.f32 %v405, 0.0
    %v409 = vld [vmem:[#allocation7 + $0x170] sm:$0xff]
    %v410 = vld [vmem:[%s3 + $0x3] sm:$0x1]
    %s412 = vtos %v410
    %v413 = vstv %s412
    %415 = vmatprep.subr.mxu0 0.0
    %416 = vmatpush1.xpose.msra.mxu0 %v408
    %417 = vmatprep.subr.mxu0 0.0
    %418 = vmatpush1.xpose.msra.mxu0 0.0
    %419 = vmatprep.subr.mxu0 0.0
    %420 = vmatpush1.xpose.msra.mxu0 0.0
    %421 = vmatprep.subr.mxu0 0.0
    %422 = vmatpush1.xpose.msra.mxu0 0.0
    %423 = vmatprep.subr.mxu0 0.0
    %424 = vmatpush1.xpose.msra.mxu0 0.0
    %425 = vmatprep.subr.mxu0 0.0
    %426 = vmatpush1.xpose.msra.mxu0 0.0
    %427 = vmatprep.subr.mxu0 0.0
    %428 = vmatpush1.xpose.msra.mxu0 0.0
    %429 = vmatprep.subr.mxu0 0.0
    %430 = vmatpush1.xpose.msra.mxu0 0.0
    %431 = vmatprep.subr.mxu0 0.0
    %432 = vmatpush1.xpose.msra.mxu0 0.0
    %433 = vmatprep.subr.mxu0 0.0
    %434 = vmatpush1.xpose.msra.mxu0 0.0
    %435 = vmatprep.subr.mxu0 0.0
    %436 = vmatpush1.xpose.msra.mxu0 0.0
    %437 = vmatprep.subr.mxu0 0.0
    %438 = vmatpush1.xpose.msra.mxu0 0.0
    %439 = vmatprep.subr.mxu0 0.0
    %440 = vmatpush1.xpose.msra.mxu0 0.0
    %441 = vmatprep.subr.mxu0 0.0
    %442 = vmatpush1.xpose.msra.mxu0 0.0
    %443 = vmatprep.subr.mxu0 0.0
    %444 = vmatpush1.xpose.msra.mxu0 0.0
    %445 = vmatprep.subr.mxu0 0.0
    %446 = vmatpush1.xpose.msra.mxu0 0.0
    %447 = vmatprep.subr.mxu0 0.0
    %448 = vmatpush1.xpose.msra.mxu0 0.0
    %449 = vmatprep.subr.mxu0 0.0
    %450 = vmatpush1.xpose.msra.mxu0 0.0
    %451 = vmatprep.subr.mxu0 0.0
    %452 = vmatpush1.xpose.msra.mxu0 0.0
    %453 = vmatprep.subr.mxu0 0.0
    %454 = vmatpush1.xpose.msra.mxu0 0.0
    %455 = vmatprep.subr.mxu0 0.0
    %456 = vmatpush1.xpose.msra.mxu0 0.0
    %457 = vmatprep.subr.mxu0 0.0
    %458 = vmatpush1.xpose.msra.mxu0 0.0
    %459 = vmatprep.subr.mxu0 0.0
    %460 = vmatpush1.xpose.msra.mxu0 0.0
    %461 = vmatprep.subr.mxu0 0.0
    %462 = vmatpush1.xpose.msra.mxu0 0.0
    %463 = vmatprep.subr.mxu0 0.0
    %464 = vmatpush1.xpose.msra.mxu0 0.0
    %465 = vmatprep.subr.mxu0 0.0
    %466 = vmatpush1.xpose.msra.mxu0 0.0
    %467 = vmatprep.subr.mxu0 0.0
    %468 = vmatpush1.xpose.msra.mxu0 0.0
    %469 = vmatprep.subr.mxu0 0.0
    %470 = vmatpush1.xpose.msra.mxu0 0.0
    %471 = vmatprep.subr.mxu0 0.0
    %472 = vmatpush1.xpose.msra.mxu0 0.0
    %473 = vmatprep.subr.mxu0 0.0
    %474 = vmatpush1.xpose.msra.mxu0 0.0
    %475 = vmatprep.subr.mxu0 0.0
    %476 = vmatpush1.xpose.msra.mxu0 0.0
    %477 = vmatprep.subr.mxu0 0.0
    %478 = vmatpush1.xpose.msra.mxu0 0.0
    %479 = vmatprep.mubr.f32.mxu0 0.0
    %480 = vmatmul.mubr.f32.gmra.mrb[0].mxu0 %v409
    %v481 = vpop.f32.mrb[0].mxu0
    %v482 = vadd.f32 %v413, %v481
    %v483 = vpop.f32.mrb[0].mxu0
    %484 = vdwg.mxu0
    %vm485 = vcmask 64512
    %486 = vst.msk [vmem:[#allocation8] sm:$0xff] %vm485, %v482
    // Predicated region
    $region30: #{tpu_custom_call.1} parent=1 // pred_check
      _
    $region31: #{tpu_custom_call.1} parent=1 // pred_check_branch
      %488 = sbr.rel (0) target = $region33
    $region32: #{tpu_custom_call.1} parent=1 // pred_region
      %s490 = ssub.s32 128, 128
      %491 = vsyncadd [#allocation4], %s490
      %s493 = sshll.u32 [#allocation8], 4
      %s494 = int_to_ptr.vmem [resolvable:$true] %s493
      %496 = dma.vmem_to_hbm [thread:$0]  %s494, 128, %s4, [#allocation4]
    $region33: #{tpu_custom_call.1} parent=1 // pred_fallthru
      _
    // Predicated region
    $region34: #{tpu_custom_call.1} parent=1 // pred_check
      _
    $region35: #{tpu_custom_call.1} parent=1 // pred_check_branch
      %498 = sbr.rel (0) target = $region37
    $region36: #{tpu_custom_call.1} parent=1 // pred_region
      %499 = dma.done [#allocation4], 128
    $region37: #{tpu_custom_call.1} parent=1 // pred_fallthru
      _
    %500 = vsyncpa [#allocation3], 1
    %501 = vsyncpa [#allocation6], 1
    %502 = vsyncpa [#allocation4], 1

</llo_original>
